<compile_context>
chip_gen: v6e
topology: v6e:2x2x1
jax: 0.10.0
libtpu: 0.0.40
codegen_flags: <defaults>
</compile_context>

<pallas_src>
import jax
import jax.numpy as jnp
from jax import lax
from jax.experimental import pallas as pl
from jax.experimental.pallas import tpu as pltpu


def _mlp_kernel(x_ref, w1t_ref, b1_ref, w2t_ref, b2_ref, o_ref):
    # x_ref:   (TB, D)  native layout (no wrapper transpose)
    # w1t_ref: (H, D),  b1_ref: (H, 1)
    # w2t_ref: (O, H),  b2_ref: (O, 1)
    # o_ref:   (O, TB)  lane-dense output (batch on lanes)

    # h^T = W1^T @ x^T  -> (H, TB); contract D with D (A @ B.T MXU pattern),
    # f32 accumulation.
    h = lax.dot_general(
        w1t_ref[...], x_ref[...],
        dimension_numbers=(((1,), (1,)), ((), ())),
        preferred_element_type=jnp.float32,
    )
    h = h + b1_ref[...]                       # (H,1) broadcast over lanes
    # LeakyReLU (PyTorch default negative_slope = 0.01) on the VPU.
    h = jnp.maximum(h, jnp.float32(0.01) * h)
    # Cast the intermediate only if the second matmul's weights are narrower.
    if w2t_ref.dtype != jnp.float32:
        h = h.astype(w2t_ref.dtype)
    # out^T = W2^T @ h^T -> (O, TB), f32 accumulation.
    out = jnp.dot(w2t_ref[...], h, preferred_element_type=jnp.float32)
    out = out + b2_ref[...]
    o_ref[...] = out.astype(o_ref.dtype)


def passive_decoder_forward(x, w1, b1, w2, b2, *, block_b=512):
    """Forward pass.

    x : (B, D);  w1 : (D, H=2D);  b1 : (H,);  w2 : (H, O);  b2 : (O,)
    Returns (B, O) in x.dtype.
    """
    B, D = x.shape
    H = w1.shape[1]
    O = w2.shape[1]

    # Lane-dense orientation for the small weight matrices / biases.
    w1t = w1.T                     # (H, D)
    w2t = w2.T                     # (O, H)
    b1c = b1.reshape(H, 1)
    b2c = b2.reshape(O, 1)

    # Batch tile: full batch when small, else a 128-multiple tile sized well
    # under the v7x scoped-VMEM budget (double-buffered x/out tiles).
    if B <= block_b:
        TB, Bp = B, B
        x_p = x
    else:
        TB = block_b
        Bp = pl.cdiv(B, TB) * TB
        x_p = jnp.pad(x, ((0, Bp - B), (0, 0))) if Bp != B else x
    grid = (Bp // TB,)

    bytes_per = jnp.dtype(x.dtype).itemsize
    cost = pl.CostEstimate(
        flops=2 * Bp * (D * H + H * O),
        transcendentals=0,
        bytes_accessed=(D * Bp + D * H + H * O + H + O + O * Bp) * bytes_per,
    )

    out_t = pl.pallas_call(
        _mlp_kernel,
        out_shape=jax.ShapeDtypeStruct((O, Bp), x.dtype),
        grid_spec=pltpu.PrefetchScalarGridSpec(
            num_scalar_prefetch=0,
            grid=grid,
            in_specs=[
                pl.BlockSpec((TB, D), lambda i: (i, 0)),   # x batch tile (native)
                pl.BlockSpec((H, D), lambda i: (0, 0)),    # W1^T (VMEM-resident)
                pl.BlockSpec((H, 1), lambda i: (0, 0)),    # b1   (VMEM-resident)
                pl.BlockSpec((O, H), lambda i: (0, 0)),    # W2^T (VMEM-resident)
                pl.BlockSpec((O, 1), lambda i: (0, 0)),    # b2   (VMEM-resident)
            ],
            out_specs=pl.BlockSpec((O, TB), lambda i: (0, i)),
        ),
        compiler_params=pltpu.CompilerParams(
            dimension_semantics=("parallel",),
        ),
        cost_estimate=cost,
    )(x_p, w1t, b1c, w2t, b2c)

    return out_t[:, :B].T


def init_params(key, input_dim, output_dim, dtype=jnp.float32):
    """Deterministic init mirroring nn.Linear shapes (stored as (in, out))."""
    hidden = input_dim * 2
    k1, k2, k3, k4 = jax.random.split(key, 4)
    lim1 = 1.0 / jnp.sqrt(input_dim)
    lim2 = 1.0 / jnp.sqrt(hidden)
    w1 = jax.random.uniform(k1, (input_dim, hidden), dtype, -lim1, lim1)
    b1 = jax.random.uniform(k2, (hidden,), dtype, -lim1, lim1)
    w2 = jax.random.uniform(k3, (hidden, output_dim), dtype, -lim2, lim2)
    b2 = jax.random.uniform(k4, (output_dim,), dtype, -lim2, lim2)
    return w1, b1, w2, b2


def reference_forward(x, w1, b1, w2, b2):
    h = x @ w1 + b1
    h = jnp.where(h > 0, h, 0.01 * h)
    return h @ w2 + b2


if __name__ == "__main__":
    key = jax.random.PRNGKey(0)
    input_dim, output_dim = 32, 16   # intern_dim is unused by the module
    kx, kp, kx2 = jax.random.split(key, 3)
    w1, b1, w2, b2 = init_params(kp, input_dim, output_dim)

    # Small case (single block, TB == B).
    batch = 8
    x = jax.random.normal(kx, (batch, input_dim), jnp.float32)
    out = jax.block_until_ready(passive_decoder_forward(x, w1, b1, w2, b2))
    ref = reference_forward(x, w1, b1, w2, b2)
    assert out.shape == (batch, output_dim)
    assert jnp.allclose(out, ref, atol=1e-5, rtol=1e-5), "mismatch (small batch)"

    # Larger ragged batch exercising the grid, resident weights, and padding.
    batch2 = 1000
    x2 = jax.random.normal(kx2, (batch2, input_dim), jnp.float32)
    out2 = jax.block_until_ready(passive_decoder_forward(x2, w1, b1, w2, b2))
    ref2 = reference_forward(x2, w1, b1, w2, b2)
    assert out2.shape == (batch2, output_dim)
    assert jnp.allclose(out2, ref2, atol=1e-5, rtol=1e-5), "mismatch (tiled batch)"

    print("KERNEL_OK")
</pallas_src>

<mosaic_0001>
module attributes {stable_mosaic.version = 11 : i64} {
  func.func @_mlp_kernel(%arg0: i32, %arg1: memref<8x32xf32, #tpu.memory_space<vmem>>, %arg2: memref<64x32xf32, #tpu.memory_space<vmem>>, %arg3: memref<64x1xf32, #tpu.memory_space<vmem>>, %arg4: memref<16x64xf32, #tpu.memory_space<vmem>>, %arg5: memref<16x1xf32, #tpu.memory_space<vmem>>, %arg6: memref<16x8xf32, #tpu.memory_space<vmem>>) attributes {dimension_semantics = [#tpu.dimension_semantics<parallel>], iteration_bounds = array<i64: 1>, scalar_prefetch = 0 : i64, scratch_operands = 0 : i64, tpu.core_type = #tpu.core_type<tc>, window_params = [{transform_indices = @transform_0, window_bounds = array<i64: 8, 32>}, {pipeline_mode = #tpu.pipeline_mode<synchronous>, transform_indices = @transform_1, window_bounds = array<i64: 64, 32>}, {pipeline_mode = #tpu.pipeline_mode<synchronous>, transform_indices = @transform_2, window_bounds = array<i64: 64, 1>}, {pipeline_mode = #tpu.pipeline_mode<synchronous>, transform_indices = @transform_3, window_bounds = array<i64: 16, 64>}, {pipeline_mode = #tpu.pipeline_mode<synchronous>, transform_indices = @transform_4, window_bounds = array<i64: 16, 1>}, {transform_indices = @transform_5, window_bounds = array<i64: 16, 8>}]} {
    %c0 = arith.constant 0 : index
    %c0_0 = arith.constant 0 : index
    %0 = vector.load %arg2[%c0, %c0_0] : memref<64x32xf32, #tpu.memory_space<vmem>>, vector<64x32xf32>
    %c0_1 = arith.constant 0 : index
    %c0_2 = arith.constant 0 : index
    %1 = vector.load %arg1[%c0_1, %c0_2] : memref<8x32xf32, #tpu.memory_space<vmem>>, vector<8x32xf32>
    %cst = arith.constant dense<0.000000e+00> : vector<64x8xf32>
    %2 = tpu.matmul %0, %1, %cst {dimension_numbers = #tpu.dot_dimension_numbers<[1], [1], [0], [0], [0, 0, 1, 0], [], []>} : vector<64x32xf32>, vector<8x32xf32>, vector<64x8xf32> -> vector<64x8xf32>
    %c0_3 = arith.constant 0 : index
    %c0_4 = arith.constant 0 : index
    %3 = vector.load %arg3[%c0_3, %c0_4] : memref<64x1xf32, #tpu.memory_space<vmem>>, vector<64x1xf32>
    %4 = vector.broadcast %3 : vector<64x1xf32> to vector<64x8xf32>
    %5 = arith.addf %2, %4 : vector<64x8xf32>
    %cst_5 = arith.constant 0.00999999977 : f32
    %6 = vector.broadcast %cst_5 : f32 to vector<64x8xf32>
    %7 = arith.mulf %6, %5 : vector<64x8xf32>
    %8 = arith.maximumf %5, %7 : vector<64x8xf32>
    %c0_6 = arith.constant 0 : index
    %c0_7 = arith.constant 0 : index
    %9 = vector.load %arg4[%c0_6, %c0_7] : memref<16x64xf32, #tpu.memory_space<vmem>>, vector<16x64xf32>
    %cst_8 = arith.constant dense<0.000000e+00> : vector<16x8xf32>
    %10 = tpu.matmul %9, %8, %cst_8 {dimension_numbers = #tpu.dot_dimension_numbers<[1], [0], [0], [1], [0, 0, 1, 1], [], []>} : vector<16x64xf32>, vector<64x8xf32>, vector<16x8xf32> -> vector<16x8xf32>
    %c0_9 = arith.constant 0 : index
    %c0_10 = arith.constant 0 : index
    %11 = vector.load %arg5[%c0_9, %c0_10] : memref<16x1xf32, #tpu.memory_space<vmem>>, vector<16x1xf32>
    %12 = vector.broadcast %11 : vector<16x1xf32> to vector<16x8xf32>
    %13 = arith.addf %10, %12 : vector<16x8xf32>
    %c0_11 = arith.constant 0 : index
    %c0_12 = arith.constant 0 : index
    %14 = vector.load %arg6[%c0_11, %c0_12] : memref<16x8xf32, #tpu.memory_space<vmem>>, vector<16x8xf32>
    tpu.vector_store %arg6[%c0_11, %c0_12], %13 {strides = array<i32>} : memref<16x8xf32, #tpu.memory_space<vmem>>, vector<16x8xf32>,
    return
  }
  func.func @transform_0(%arg0: i32) -> (i32, i32) {
    %c0_i32 = arith.constant 0 : i32
    %c0_i32_0 = arith.constant 0 : i32
    return %arg0, %c0_i32 : i32, i32
  }
  func.func @transform_1(%arg0: i32) -> (i32, i32) {
    %c0_i32 = arith.constant 0 : i32
    %c0_i32_0 = arith.constant 0 : i32
    %c0_i32_1 = arith.constant 0 : i32
    return %c0_i32, %c0_i32_0 : i32, i32
  }
  func.func @transform_2(%arg0: i32) -> (i32, i32) {
    %c0_i32 = arith.constant 0 : i32
    %c0_i32_0 = arith.constant 0 : i32
    %c0_i32_1 = arith.constant 0 : i32
    return %c0_i32, %c0_i32_0 : i32, i32
  }
  func.func @transform_3(%arg0: i32) -> (i32, i32) {
    %c0_i32 = arith.constant 0 : i32
    %c0_i32_0 = arith.constant 0 : i32
    %c0_i32_1 = arith.constant 0 : i32
    return %c0_i32, %c0_i32_0 : i32, i32
  }
  func.func @transform_4(%arg0: i32) -> (i32, i32) {
    %c0_i32 = arith.constant 0 : i32
    %c0_i32_0 = arith.constant 0 : i32
    %c0_i32_1 = arith.constant 0 : i32
    return %c0_i32, %c0_i32_0 : i32, i32
  }
  func.func @transform_5(%arg0: i32) -> (i32, i32) {
    %c0_i32 = arith.constant 0 : i32
    %c0_i32_0 = arith.constant 0 : i32
    return %c0_i32, %arg0 : i32, i32
  }
}

</mosaic_0001>

<llo_original>
// kernel: tpu_custom_call.1
$region0: #{tpu_custom_call.1}
  #allocation0 [shape = 'u32[]', space=smem, size = 0x4, offset = 0x4, fixed_abs, tag = 'smem constant byte address 0x4 - core index']
  #allocation1 [shape = 'u32[144,128]{1,0:T(1,128)}', space=vmem, size = 0x12000, scoped, tag = 'internal scratch']
  %s0 = inlined_call_operand.vmem [shape: f32[8,32], index: 0, kind: input, shape index: {}]
  %s1 = inlined_call_operand.vmem [shape: f32[64,32], index: 1, kind: input, shape index: {}]
  %s2 = inlined_call_operand.vmem [shape: f32[64,1], index: 2, kind: input, shape index: {}]
  %s3 = inlined_call_operand.vmem [shape: f32[16,64], index: 3, kind: input, shape index: {}]
  %s4 = inlined_call_operand.vmem [shape: f32[16,1], index: 4, kind: input, shape index: {}]
  %s5 = inlined_call_operand.vmem [shape: f32[16,8], index: 5, kind: output, shape index: {}]
  %s6 = sld [smem:[#allocation0]]
  $region30: #{tpu_custom_call.1} parent=0
    _
  %s8 = ssub.s32 1, %s6
  %s9 = scalar_select 0, %s8, %s6
  // Predicated region
  $region2: #{tpu_custom_call.1} parent=0 // pred_check
    _
  $region3: #{tpu_custom_call.1} parent=0 // pred_check_branch
    %11 = sbr.rel (0) target = $region5
  $region4: #{tpu_custom_call.1} parent=0 // pred_region
    _
  $region5: #{tpu_custom_call.1} parent=0 // pred_fallthru
    _
  // Predicated region
  $region6: #{tpu_custom_call.1} parent=0 // pred_check
    _
  $region7: #{tpu_custom_call.1} parent=0 // pred_check_branch
    %13 = sbr.rel (0) target = $region9
  $region8: #{tpu_custom_call.1} parent=0 // pred_region
    _
  $region9: #{tpu_custom_call.1} parent=0 // pred_fallthru
    _
  // Predicated region
  $region10: #{tpu_custom_call.1} parent=0 // pred_check
    _
  $region11: #{tpu_custom_call.1} parent=0 // pred_check_branch
    %15 = sbr.rel (0) target = $region13
  $region12: #{tpu_custom_call.1} parent=0 // pred_region
    _
  $region13: #{tpu_custom_call.1} parent=0 // pred_fallthru
    _
  // Predicated region
  $region14: #{tpu_custom_call.1} parent=0 // pred_check
    _
  $region15: #{tpu_custom_call.1} parent=0 // pred_check_branch
    %17 = sbr.rel (0) target = $region17
  $region16: #{tpu_custom_call.1} parent=0 // pred_region
    _
  $region17: #{tpu_custom_call.1} parent=0 // pred_fallthru
    _
  // Predicated region
  $region18: #{tpu_custom_call.1} parent=0 // pred_check
    _
  $region19: #{tpu_custom_call.1} parent=0 // pred_check_branch
    %19 = sbr.rel (0) target = $region21
  $region20: #{tpu_custom_call.1} parent=0 // pred_region
    _
  $region21: #{tpu_custom_call.1} parent=0 // pred_fallthru
    _
  %v20 = vld [vmem:[%s1] sm:$0xff]
  %v21 = vld [vmem:[%s1 + $0x8] sm:$0xff]
  %v22 = vld [vmem:[%s1 + $0x10] sm:$0xff]
  %v23 = vld [vmem:[%s1 + $0x18] sm:$0xff]
  %v24 = vld [vmem:[%s1 + $0x20] sm:$0xff]
  %v25 = vld [vmem:[%s1 + $0x28] sm:$0xff]
  %v26 = vld [vmem:[%s1 + $0x30] sm:$0xff]
  %v27 = vld [vmem:[%s1 + $0x38] sm:$0xff]
  %v28 = vld [vmem:[%s0] sm:$0xff]
  %v29 = vld [vmem:[%s2] sm:$0xff]
  %v30 = vld [vmem:[%s2 + $0x8] sm:$0xff]
  %v31 = vld [vmem:[%s2 + $0x10] sm:$0xff]
  %v32 = vld [vmem:[%s2 + $0x18] sm:$0xff]
  %v33 = vld [vmem:[%s2 + $0x20] sm:$0xff]
  %v34 = vld [vmem:[%s2 + $0x28] sm:$0xff]
  %v35 = vld [vmem:[%s2 + $0x30] sm:$0xff]
  %v36 = vld [vmem:[%s2 + $0x38] sm:$0xff]
  %38 = vset.pattern.permute.xlu0 0
  %39 = vperm.xlu0 %38, %v29
  %v40 = vpop.permute.xlu0 %39
  %43 = vset.pattern.permute.xlu0 0
  %44 = vperm.xlu0 %43, %v30
  %v45 = vpop.permute.xlu0 %44
  %48 = vset.pattern.permute.xlu0 0
  %49 = vperm.xlu0 %48, %v31
  %v50 = vpop.permute.xlu0 %49
  %53 = vset.pattern.permute.xlu0 0
  %54 = vperm.xlu0 %53, %v32
  %v55 = vpop.permute.xlu0 %54
  %58 = vset.pattern.permute.xlu0 0
  %59 = vperm.xlu0 %58, %v33
  %v60 = vpop.permute.xlu0 %59
  %63 = vset.pattern.permute.xlu0 0
  %64 = vperm.xlu0 %63, %v34
  %v65 = vpop.permute.xlu0 %64
  %68 = vset.pattern.permute.xlu0 0
  %69 = vperm.xlu0 %68, %v35
  %v70 = vpop.permute.xlu0 %69
  %73 = vset.pattern.permute.xlu0 0
  %74 = vperm.xlu0 %73, %v36
  %v75 = vpop.permute.xlu0 %74
  %vm77 = vcmask 261120
  %v79 = vsel %vm77, %v20, 0
  %v82 = vsel %vm77, %v21, 0
  %v85 = vsel %vm77, %v22, 0
  %v88 = vsel %vm77, %v23, 0
  %v91 = vsel %vm77, %v24, 0
  %v94 = vsel %vm77, %v25, 0
  %v97 = vsel %vm77, %v26, 0
  %v100 = vsel %vm77, %v27, 0
  %v103 = vsel %vm77, %v28, 0
  %105 = vmatprep.subr.mxu0 0.0
  %106 = vmatpush1.xpose.msra.mxu0 0.0
  %107 = vmatprep.subr.mxu0 0.0
  %108 = vmatpush1.xpose.msra.mxu0 0.0
  %109 = vmatprep.subr.mxu0 0.0
  %110 = vmatpush1.xpose.msra.mxu0 0.0
  %111 = vmatprep.subr.mxu0 0.0
  %112 = vmatpush1.xpose.msra.mxu0 0.0
  %113 = vmatprep.subr.mxu0 0.0
  %114 = vmatpush1.xpose.msra.mxu0 0.0
  %115 = vmatprep.subr.mxu0 0.0
  %116 = vmatpush1.xpose.msra.mxu0 0.0
  %117 = vmatprep.subr.mxu0 0.0
  %118 = vmatpush1.xpose.msra.mxu0 0.0
  %119 = vmatprep.subr.mxu0 0.0
  %120 = vmatpush1.xpose.msra.mxu0 0.0
  %121 = vmatprep.subr.mxu0 0.0
  %122 = vmatpush1.xpose.msra.mxu0 0.0
  %123 = vmatprep.subr.mxu0 0.0
  %124 = vmatpush1.xpose.msra.mxu0 0.0
  %125 = vmatprep.subr.mxu0 0.0
  %126 = vmatpush1.xpose.msra.mxu0 0.0
  %127 = vmatprep.subr.mxu0 0.0
  %128 = vmatpush1.xpose.msra.mxu0 0.0
  %129 = vmatprep.subr.mxu0 0.0
  %130 = vmatpush1.xpose.msra.mxu0 0.0
  %131 = vmatprep.subr.mxu0 0.0
  %132 = vmatpush1.xpose.msra.mxu0 0.0
  %133 = vmatprep.subr.mxu0 0.0
  %134 = vmatpush1.xpose.msra.mxu0 0.0
  %135 = vmatprep.subr.mxu0 0.0
  %136 = vmatpush1.xpose.msra.mxu0 %v103
  %137 = vmatprep.subr.mxu0 0.0
  %138 = vmatpush2.xpose.msra.mxu0 0.0
  %139 = vmatprep.subr.mxu0 0.0
  %140 = vmatpush2.xpose.msra.mxu0 0.0
  %141 = vmatprep.subr.mxu0 0.0
  %142 = vmatpush2.xpose.msra.mxu0 0.0
  %143 = vmatprep.subr.mxu0 0.0
  %144 = vmatpush2.xpose.msra.mxu0 0.0
  %145 = vmatprep.subr.mxu0 0.0
  %146 = vmatpush2.xpose.msra.mxu0 0.0
  %147 = vmatprep.subr.mxu0 0.0
  %148 = vmatpush2.xpose.msra.mxu0 0.0
  %149 = vmatprep.subr.mxu0 0.0
  %150 = vmatpush2.xpose.msra.mxu0 0.0
  %151 = vmatprep.subr.mxu0 0.0
  %152 = vmatpush2.xpose.msra.mxu0 0.0
  %153 = vmatprep.subr.mxu0 0.0
  %154 = vmatpush2.xpose.msra.mxu0 0.0
  %155 = vmatprep.subr.mxu0 0.0
  %156 = vmatpush2.xpose.msra.mxu0 0.0
  %157 = vmatprep.subr.mxu0 0.0
  %158 = vmatpush2.xpose.msra.mxu0 0.0
  %159 = vmatprep.subr.mxu0 0.0
  %160 = vmatpush2.xpose.msra.mxu0 0.0
  %161 = vmatprep.subr.mxu0 0.0
  %162 = vmatpush2.xpose.msra.mxu0 0.0
  %163 = vmatprep.subr.mxu0 0.0
  %164 = vmatpush2.xpose.msra.mxu0 0.0
  %165 = vmatprep.subr.mxu0 0.0
  %166 = vmatpush2.xpose.msra.mxu0 0.0
  %167 = vmatprep.subr.mxu0 0.0
  %168 = vmatpush2.xpose.msra.mxu0 0.0
  %169 = vmatprep.mubr.f32.mxu0 0.0
  %170 = vmatmul.mubr.f32.gmra.mxu0 %v79
  %v171 = vpop.f32.mrf.mxu0
  %v172 = vadd.f32 %v40, %v171
  %v173 = vpop.f32.mrf.mxu0
  %174 = vmatprep.mubr.f32.mxu0 0.0
  %175 = vmatmul.mubr.f32.gmra.mxu0 %v82
  %v176 = vpop.f32.mrf.mxu0
  %v177 = vadd.f32 %v45, %v176
  %v178 = vpop.f32.mrf.mxu0
  %179 = vmatprep.mubr.f32.mxu0 0.0
  %180 = vmatmul.mubr.f32.gmra.mxu0 %v85
  %v181 = vpop.f32.mrf.mxu0
  %v182 = vadd.f32 %v50, %v181
  %v183 = vpop.f32.mrf.mxu0
  %184 = vmatprep.mubr.f32.mxu0 0.0
  %185 = vmatmul.mubr.f32.gmra.mxu0 %v88
  %v186 = vpop.f32.mrf.mxu0
  %v187 = vadd.f32 %v55, %v186
  %v188 = vpop.f32.mrf.mxu0
  %189 = vmatprep.mubr.f32.mxu0 0.0
  %190 = vmatmul.mubr.f32.gmra.mxu0 %v91
  %v191 = vpop.f32.mrf.mxu0
  %v192 = vadd.f32 %v60, %v191
  %v193 = vpop.f32.mrf.mxu0
  %194 = vmatprep.mubr.f32.mxu0 0.0
  %195 = vmatmul.mubr.f32.gmra.mxu0 %v94
  %v196 = vpop.f32.mrf.mxu0
  %v197 = vadd.f32 %v65, %v196
  %v198 = vpop.f32.mrf.mxu0
  %199 = vmatprep.mubr.f32.mxu0 0.0
  %200 = vmatmul.mubr.f32.gmra.mxu0 %v97
  %v201 = vpop.f32.mrf.mxu0
  %v202 = vadd.f32 %v70, %v201
  %v203 = vpop.f32.mrf.mxu0
  %204 = vmatprep.mubr.f32.mxu0 0.0
  %205 = vmatmul.mubr.f32.gmra.mxu0 %v100
  %v206 = vpop.f32.mrf.mxu0
  %v207 = vadd.f32 %v75, %v206
  %v208 = vpop.f32.mrf.mxu0
  %209 = vdwg.mxu0
  %v210 = vmul.f32 %v172, 0.01
  %v211 = vmul.f32 %v177, 0.01
  %v212 = vmul.f32 %v182, 0.01
  %v213 = vmul.f32 %v187, 0.01
  %v214 = vmul.f32 %v192, 0.01
  %v215 = vmul.f32 %v197, 0.01
  %v216 = vmul.f32 %v202, 0.01
  %v217 = vmul.f32 %v207, 0.01
  %v218 = vmax.f32 %v172, %v210
  %v219 = vmax.f32 %v177, %v211
  %v220 = vmax.f32 %v182, %v212
  %v221 = vmax.f32 %v187, %v213
  %v222 = vmax.f32 %v192, %v214
  %v223 = vmax.f32 %v197, %v215
  %v224 = vmax.f32 %v202, %v216
  %v225 = vmax.f32 %v207, %v217
  %v226 = vld [vmem:[%s3] sm:$0xff]
  %v227 = vld [vmem:[%s3 + $0x8] sm:$0xff]
  %v228 = vld [vmem:[%s4] sm:$0xff]
  %v229 = vld [vmem:[%s4 + $0x8] sm:$0xff]
  %231 = vset.pattern.permute.xlu0 0
  %232 = vperm.xlu0 %231, %v228
  %v233 = vpop.permute.xlu0 %232
  %236 = vset.pattern.permute.xlu0 0
  %237 = vperm.xlu0 %236, %v229
  %v238 = vpop.permute.xlu0 %237
  %vm240 = vcmask 523264
  %v242 = vsel %vm240, %v226, 0
  %v245 = vsel %vm240, %v227, 0
  %247 = vmatprep.subr.mxu0 0.0
  %248 = vmatpush1.msra.mxu0 0.0
  %249 = vmatprep.subr.mxu0 0.0
  %250 = vmatpush1.msra.mxu0 0.0
  %251 = vmatprep.subr.mxu0 0.0
  %252 = vmatpush1.msra.mxu0 0.0
  %253 = vmatprep.subr.mxu0 0.0
  %254 = vmatpush1.msra.mxu0 0.0
  %255 = vmatprep.subr.mxu0 0.0
  %256 = vmatpush1.msra.mxu0 0.0
  %257 = vmatprep.subr.mxu0 0.0
  %258 = vmatpush1.msra.mxu0 0.0
  %259 = vmatprep.subr.mxu0 0.0
  %260 = vmatpush1.msra.mxu0 0.0
  %261 = vmatprep.subr.mxu0 0.0
  %262 = vmatpush1.msra.mxu0 0.0
  %263 = vmatprep.subr.mxu0 0.0
  %264 = vmatpush1.msra.mxu0 %v225
  %265 = vmatprep.subr.mxu0 0.0
  %266 = vmatpush1.msra.mxu0 %v224
  %267 = vmatprep.subr.mxu0 0.0
  %268 = vmatpush1.msra.mxu0 %v223
  %269 = vmatprep.subr.mxu0 0.0
  %270 = vmatpush1.msra.mxu0 %v222
  %271 = vmatprep.subr.mxu0 0.0
  %272 = vmatpush1.msra.mxu0 %v221
  %273 = vmatprep.subr.mxu0 0.0
  %274 = vmatpush1.msra.mxu0 %v220
  %275 = vmatprep.subr.mxu0 0.0
  %276 = vmatpush1.msra.mxu0 %v219
  %277 = vmatprep.subr.mxu0 0.0
  %278 = vmatpush1.msra.mxu0 %v218
  %279 = vmatprep.subr.mxu0 0.0
  %280 = vmatpush2.msra.mxu0 0.0
  %281 = vmatprep.subr.mxu0 0.0
  %282 = vmatpush2.msra.mxu0 0.0
  %283 = vmatprep.subr.mxu0 0.0
  %284 = vmatpush2.msra.mxu0 0.0
  %285 = vmatprep.subr.mxu0 0.0
  %286 = vmatpush2.msra.mxu0 0.0
  %287 = vmatprep.subr.mxu0 0.0
  %288 = vmatpush2.msra.mxu0 0.0
  %289 = vmatprep.subr.mxu0 0.0
  %290 = vmatpush2.msra.mxu0 0.0
  %291 = vmatprep.subr.mxu0 0.0
  %292 = vmatpush2.msra.mxu0 0.0
  %293 = vmatprep.subr.mxu0 0.0
  %294 = vmatpush2.msra.mxu0 0.0
  %295 = vmatprep.subr.mxu0 0.0
  %296 = vmatpush2.msra.mxu0 0.0
  %297 = vmatprep.subr.mxu0 0.0
  %298 = vmatpush2.msra.mxu0 0.0
  %299 = vmatprep.subr.mxu0 0.0
  %300 = vmatpush2.msra.mxu0 0.0
  %301 = vmatprep.subr.mxu0 0.0
  %302 = vmatpush2.msra.mxu0 0.0
  %303 = vmatprep.subr.mxu0 0.0
  %304 = vmatpush2.msra.mxu0 0.0
  %305 = vmatprep.subr.mxu0 0.0
  %306 = vmatpush2.msra.mxu0 0.0
  %307 = vmatprep.subr.mxu0 0.0
  %308 = vmatpush2.msra.mxu0 0.0
  %309 = vmatprep.subr.mxu0 0.0
  %310 = vmatpush2.msra.mxu0 0.0
  %311 = vmatprep.mubr.f32.mxu0 0.0
  %312 = vmatmul.mubr.f32.gmra.mxu0 %v242
  %v313 = vpop.f32.mrf.mxu0
  %v314 = vadd.f32 %v233, %v313
  %v315 = vpop.f32.mrf.mxu0
  %316 = vmatprep.mubr.f32.mxu0 0.0
  %317 = vmatmul.mubr.f32.gmra.mxu0 %v245
  %v318 = vpop.f32.mrf.mxu0
  %v319 = vadd.f32 %v238, %v318
  %v320 = vpop.f32.mrf.mxu0
  %321 = vdwg.mxu0
  %vm322 = vcmask 64512
  %323 = vst.msk [vmem:[%s5] sm:$0xff] %vm322, %v314
  %324 = vst.msk [vmem:[%s5 + $0x8] sm:$0xff] %vm322, %v319
  // Predicated region
  $region22: #{tpu_custom_call.1} parent=0 // pred_check
    _
  $region23: #{tpu_custom_call.1} parent=0 // pred_check_branch
    %326 = sbr.rel (0) target = $region25
  $region24: #{tpu_custom_call.1} parent=0 // pred_region
    _
  $region25: #{tpu_custom_call.1} parent=0 // pred_fallthru
    _
  // Predicated region
  $region26: #{tpu_custom_call.1} parent=0 // pred_check
    _
  $region27: #{tpu_custom_call.1} parent=0 // pred_check_branch
    %328 = sbr.rel (0) target = $region29
  $region28: #{tpu_custom_call.1} parent=0 // pred_region
    _
  $region29: #{tpu_custom_call.1} parent=0 // pred_fallthru
    _

</llo_original>
